<compile_context>
chip_gen: v7x
topology: tpu7x:2x2x1
jax: 0.10.0
libtpu: 0.0.40
codegen_flags: <defaults>
</compile_context>

<pallas_src>
import functools
import math

import jax
import jax.numpy as jnp
from jax import lax
from jax.experimental import pallas as pl
from jax.experimental.pallas import tpu as pltpu

EPS = 1e-6
HIST_H = 64          # histogram bins per axis
HIST_INSZ = 128      # max input size before bilinear resize
HIST_SIGMA = 0.02    # inverse-quadratic kernel sigma
HIST_LO = -3.0       # hist_boundary[0]
HIST_HI = 3.0        # hist_boundary[1]


# ----------------------------------------------------------------------------
# Pallas kernel: RGB-uv histogram slab for one (image, pixel-split) cell
# ----------------------------------------------------------------------------
def _hist_kernel(x_ref, o_ref, *, h, sigma, lo, hi, npix, chunk, n_chunks,
                 masked):
    """x_ref: (n_chunks, 3, chunk) f32 pixels (already clamped to [0, 1]).
    o_ref: (2h, 2h) f32 slab  [[ (K1*Iy)K2^T , (K1*Iy)K3^T ],
                               [   unused    , (K2*Iy)K3^T ]]."""
    inv_s2 = 1.0 / (sigma * sigma)
    step = (hi - lo) / (h - 1)
    # (h, 1) float bin centers — built once per grid cell, hoisted out of loop.
    centers = lo + step * lax.broadcasted_iota(
        jnp.int32, (h, 1), 0).astype(jnp.float32)
    split_off = pl.program_id(1) * (n_chunks * chunk)
    lane = (lax.broadcasted_iota(jnp.int32, (1, chunk), 1) if masked else None)

    def kmat(u):                                 # (1, chunk) -> (h, chunk)
        d = u - centers
        # inverse-quadratic kernel; approx reciprocal runs on the idle EUP slot
        return pl.reciprocal(1.0 + (d * d) * inv_s2, approx=True)

    def body(c, acc):
        blk = x_ref[c]                           # (3, chunk)
        r, g, b = blk[0:1, :], blk[1:2, :], blk[2:3, :]
        iy = jnp.sqrt(r * r + g * g + b * b + EPS)      # intensity scale I_y
        if masked:                               # zero out padded pixels
            iy = jnp.where(split_off + c * chunk + lane < npix, iy, 0.0)
        lr = jnp.log(r + EPS)
        lg = jnp.log(g + EPS)
        lb = jnp.log(b + EPS)
        k1 = kmat(lr - lg)                       # log(R/G)
        k2 = kmat(lr - lb)                       # log(R/B)
        k3 = kmat(lg - lb)                       # log(G/B)
        lhs = jnp.concatenate([k1, k2], axis=0) * iy    # (2h, chunk)
        rhs = jnp.concatenate([k2, k3], axis=0)         # (2h, chunk)
        return acc + lax.dot_general(
            lhs, rhs, (((1,), (1,)), ((), ())),
            preferred_element_type=jnp.float32)

    acc = lax.fori_loop(0, n_chunks, body,
                        jnp.zeros((2 * h, 2 * h), jnp.float32))
    o_ref[...] = acc                             # single lane-dense 128-wide store


# ----------------------------------------------------------------------------
# RGBuvHistBlock forward
# ----------------------------------------------------------------------------
def rgb_uv_hist(x, *, h=HIST_H, insz=HIST_INSZ, sigma=HIST_SIGMA,
                lo=HIST_LO, hi=HIST_HI, chunk=512):
    """x: (N, C, H, W) -> normalized histograms (N, 3, h, h)."""
    # The bin-flip symmetry used below requires a boundary symmetric about 0.
    assert abs(lo + hi) < 1e-12, "flip-symmetry trick requires lo == -hi"

    x = jnp.clip(x.astype(jnp.float32), 0.0, 1.0)        # torch.clamp(x, 0, 1)
    N, C, H, W = x.shape
    if H > insz or W > insz:
        x = jax.image.resize(x, (N, C, insz, insz), method="bilinear",
                             antialias=False)
        # TODO(synk): 'sampling' resizing mode of RGBuvHistBlock not implemented
        # (HistLoss uses the default 'interpolation' mode).
    if C > 3:
        x = x[:, :3]
    _, _, Hs, Ws = x.shape
    P = Hs * Ws

    # v7x megacore: if the batch alone cannot feed both TensorCores, split the
    # pixel range in two parallel grid cells and sum the partials in glue.
    nsplit = 1 if N >= 2 else 2
    unit = chunk * nsplit
    Pp = ((P + unit - 1) // unit) * unit
    n_chunks = Pp // unit

    xf = x.reshape(N, 3, P)
    if Pp != P:
        xf = jnp.pad(xf, ((0, 0), (0, 0), (0, Pp - P)))
    # (N, nsplit*n_chunks, 3, chunk): the chunk index is a leading dim, so the
    # kernel walks it with a cheap dynamic index (no lane-dim dynamic slices).
    xf = xf.reshape(N, 3, nsplit * n_chunks, chunk).transpose(0, 2, 1, 3)

    kernel = functools.partial(_hist_kernel, h=h, sigma=sigma, lo=lo, hi=hi,
                               npix=P, chunk=chunk, n_chunks=n_chunks,
                               masked=(Pp != P))
    slabs = pl.pallas_call(
        kernel,
        out_shape=jax.ShapeDtypeStruct((N, nsplit, 2 * h, 2 * h), jnp.float32),
        grid_spec=pltpu.PrefetchScalarGridSpec(
            num_scalar_prefetch=0,
            grid=(N, nsplit),                    # both axes independent
            in_specs=[pl.BlockSpec((None, n_chunks, 3, chunk),
                                   lambda n, s: (n, s, 0, 0))],
            out_specs=pl.BlockSpec((None, None, 2 * h, 2 * h),
                                   lambda n, s: (n, s, 0, 0)),
        ),
        compiler_params=pltpu.CompilerParams(
            dimension_semantics=("parallel", "parallel")),
    )(xf)

    # --- tiny plain-JAX tail (N*3*h*h floats): unpack quadrants, apply the
    # bin-flip symmetry (k(-d) == flip(k(d)) over bins), then normalize.
    slab = jnp.sum(slabs, axis=1)                        # (N, 2h, 2h)
    h0 = slab[:, :h, :h]                                 # log(R/G) x log(R/B)
    h1 = slab[:, :h, h:][:, ::-1, :]                     # log(G/R) x log(G/B)
    h2 = slab[:, h:, h:][:, ::-1, ::-1]                  # log(B/R) x log(B/G)
    hists = jnp.stack([h0, h1, h2], axis=1)              # (N, 3, h, h)
    total = jnp.sum(hists, axis=(1, 2, 3), keepdims=True)
    return hists / (total + EPS)


# ----------------------------------------------------------------------------
# HistLoss forward
# ----------------------------------------------------------------------------
@jax.jit
def hist_loss(img_pred, gt):
    n = img_pred.shape[0]
    if img_pred.shape == gt.shape:
        # One pallas_call covers both images (halves launch overhead and
        # guarantees batch >= 2 so both v7x TensorCores are fed).
        hists = rgb_uv_hist(jnp.concatenate([img_pred, gt], axis=0))
        h_pred, h_gt = hists[:n], hists[n:]
    else:
        h_pred, h_gt = rgb_uv_hist(img_pred), rgb_uv_hist(gt)
    # Hellinger distance over N*3*64*64 floats: cheaper in plain JAX than
    # extra pallas_call launches + HBM round-trips (per perf review).
    ssd = jnp.sum((jnp.sqrt(h_gt) - jnp.sqrt(h_pred)) ** 2)
    return (1.0 / math.sqrt(2.0)) * jnp.sqrt(ssd) / n


# ----------------------------------------------------------------------------
# Pure-JAX reference (mirrors the PyTorch module op-for-op) for validation
# ----------------------------------------------------------------------------
def _hist_block_ref(x, h=HIST_H, insz=HIST_INSZ, sigma=HIST_SIGMA):
    x = jnp.clip(x.astype(jnp.float32), 0.0, 1.0)
    N, C, H, W = x.shape
    if H > insz or W > insz:
        x = jax.image.resize(x, (N, C, insz, insz), method="bilinear",
                             antialias=False)
    if C > 3:
        x = x[:, :3]
    centers = jnp.linspace(HIST_LO, HIST_HI, h)
    out = []
    for l in range(x.shape[0]):
        I = x[l].reshape(3, -1).T                    # (P, 3)
        II = I ** 2
        Iy = jnp.sqrt(II[:, 0] + II[:, 1] + II[:, 2] + EPS)[:, None]
        logI = jnp.log(I + EPS)
        planes = []
        for (c, o1, o2) in ((0, 1, 2), (1, 0, 2), (2, 0, 1)):
            du = jnp.abs((logI[:, c:c + 1] - logI[:, o1:o1 + 1]) - centers[None, :])
            dv = jnp.abs((logI[:, c:c + 1] - logI[:, o2:o2 + 1]) - centers[None, :])
            ku = 1.0 / (1.0 + (du ** 2) / sigma ** 2)
            kv = 1.0 / (1.0 + (dv ** 2) / sigma ** 2)
            a = (Iy * ku).T
            planes.append(jnp.matmul(a, kv, precision=lax.Precision.HIGHEST))
        out.append(jnp.stack(planes))
    hists = jnp.stack(out)
    total = jnp.sum(hists, axis=(1, 2, 3), keepdims=True)
    return hists / (total + EPS)


def hist_loss_ref(pred, gt):
    hp = _hist_block_ref(pred)
    hg = _hist_block_ref(gt)
    ssd = jnp.sum((jnp.sqrt(hg) - jnp.sqrt(hp)) ** 2)
    return (1.0 / math.sqrt(2.0)) * jnp.sqrt(ssd) / pred.shape[0]


if __name__ == "__main__":
    key = jax.random.PRNGKey(0)
    k1, k2 = jax.random.split(key)

    # Small inputs (<= insz, so no resize branch): batch=2, channels=3, 16x16.
    img_pred = jax.random.uniform(k1, (2, 3, 16, 16), jnp.float32)
    gt = jax.random.uniform(k2, (2, 3, 16, 16), jnp.float32)

    loss = hist_loss(img_pred, gt)
    jax.block_until_ready(loss)

    ref = hist_loss_ref(img_pred, gt)
    out_f, ref_f = float(loss), float(ref)
    assert jnp.isfinite(loss), loss
    assert abs(out_f - ref_f) <= 1e-2 * abs(ref_f) + 1e-4, (out_f, ref_f)

    # Also exercise the batch==1 pixel-split (megacore) path of the kernel.
    h1 = jax.jit(rgb_uv_hist)(img_pred[:1])
    jax.block_until_ready(h1)
    h1_ref = _hist_block_ref(img_pred[:1])
    assert jnp.allclose(h1, h1_ref, rtol=5e-2, atol=1e-4), \
        float(jnp.max(jnp.abs(h1 - h1_ref)))

    print("KERNEL_OK")
</pallas_src>

<mosaic_0001>
module attributes {stable_mosaic.version = 11 : i64} {
  func.func @_hist_kernel(%arg0: i32, %arg1: i32, %arg2: memref<1x1x3x512xf32, #tpu.memory_space<vmem>>, %arg3: memref<1x1x128x128xf32, #tpu.memory_space<vmem>>) attributes {dimension_semantics = [#tpu.dimension_semantics<parallel>, #tpu.dimension_semantics<parallel>], iteration_bounds = array<i64: 4, 1>, scalar_prefetch = 0 : i64, scratch_operands = 0 : i64, tpu.core_type = #tpu.core_type<tc>, window_params = [{transform_indices = @transform_0, window_bounds = array<i64: 1, 1, 3, 512>}, {transform_indices = @transform_1, window_bounds = array<i64: 1, 1, 128, 128>}]} {
    %0 = tpu.iota {dimensions = array<i32: 0>} : vector<64x1xi32>
    %1 = arith.sitofp %0 : vector<64x1xi32> to vector<64x1xf32>
    %cst = arith.constant 0.095238097 : f32
    %2 = vector.broadcast %cst : f32 to vector<64x1xf32>
    %3 = arith.mulf %2, %1 : vector<64x1xf32>
    %cst_0 = arith.constant -3.000000e+00 : f32
    %4 = vector.broadcast %cst_0 : f32 to vector<64x1xf32>
    %5 = arith.addf %4, %3 : vector<64x1xf32>
    %c512_i32 = arith.constant 512 : i32
    %6 = arith.muli %arg1, %c512_i32 : i32
    %7 = tpu.iota {dimensions = array<i32: 1>} : vector<1x512xi32>
    %cst_1 = arith.constant 0.000000e+00 : f32
    %8 = vector.broadcast %cst_1 : f32 to vector<128x128xf32>
    %c0_i32 = arith.constant 0 : i32
    %c0 = arith.constant 0 : index
    %9 = arith.index_cast %c0_i32 : i32 to index
    %c0_2 = arith.constant 0 : index
    %c0_3 = arith.constant 0 : index
    %10 = vector.load %arg2[%c0, %9, %c0_2, %c0_3] : memref<1x1x3x512xf32, #tpu.memory_space<vmem>>, vector<1x1x3x512xf32>
    %11 = vector.shape_cast %10 : vector<1x1x3x512xf32> to vector<3x512xf32>
    %12 = vector.extract_strided_slice %11 {offsets = [0, 0], sizes = [1, 512], strides = [1, 1]} : vector<3x512xf32> to vector<1x512xf32>
    %13 = vector.extract_strided_slice %11 {offsets = [1, 0], sizes = [1, 512], strides = [1, 1]} : vector<3x512xf32> to vector<1x512xf32>
    %14 = vector.extract_strided_slice %11 {offsets = [2, 0], sizes = [1, 512], strides = [1, 1]} : vector<3x512xf32> to vector<1x512xf32>
    %15 = arith.mulf %12, %12 : vector<1x512xf32>
    %16 = arith.mulf %13, %13 : vector<1x512xf32>
    %17 = arith.addf %15, %16 : vector<1x512xf32>
    %18 = arith.mulf %14, %14 : vector<1x512xf32>
    %19 = arith.addf %17, %18 : vector<1x512xf32>
    %cst_4 = arith.constant 9.99999997E-7 : f32
    %20 = vector.broadcast %cst_4 : f32 to vector<1x512xf32>
    %21 = arith.addf %19, %20 : vector<1x512xf32>
    %22 = math.sqrt %21 : vector<1x512xf32>
    %c512_i32_5 = arith.constant 512 : i32
    %23 = arith.muli %c0_i32, %c512_i32_5 : i32
    %24 = arith.addi %6, %23 : i32
    %25 = vector.broadcast %24 : i32 to vector<1x512xi32>
    %26 = arith.addi %25, %7 : vector<1x512xi32>
    %c256_i32 = arith.constant 256 : i32
    %27 = vector.broadcast %c256_i32 : i32 to vector<1x512xi32>
    %28 = arith.cmpi slt, %26, %27 : vector<1x512xi32>
    %cst_6 = arith.constant 0.000000e+00 : f32
    %29 = vector.broadcast %cst_6 : f32 to vector<1x512xf32>
    %30 = arith.select %28, %22, %29 : vector<1x512xi1>, vector<1x512xf32>
    %cst_7 = arith.constant 9.99999997E-7 : f32
    %31 = vector.broadcast %cst_7 : f32 to vector<1x512xf32>
    %32 = arith.addf %12, %31 : vector<1x512xf32>
    %33 = math.log %32 : vector<1x512xf32>
    %cst_8 = arith.constant 9.99999997E-7 : f32
    %34 = vector.broadcast %cst_8 : f32 to vector<1x512xf32>
    %35 = arith.addf %13, %34 : vector<1x512xf32>
    %36 = math.log %35 : vector<1x512xf32>
    %cst_9 = arith.constant 9.99999997E-7 : f32
    %37 = vector.broadcast %cst_9 : f32 to vector<1x512xf32>
    %38 = arith.addf %14, %37 : vector<1x512xf32>
    %39 = math.log %38 : vector<1x512xf32>
    %40 = arith.subf %33, %36 : vector<1x512xf32>
    %41 = vector.broadcast %40 : vector<1x512xf32> to vector<64x512xf32>
    %42 = vector.broadcast %5 : vector<64x1xf32> to vector<64x512xf32>
    %43 = arith.subf %41, %42 : vector<64x512xf32>
    %44 = arith.mulf %43, %43 : vector<64x512xf32>
    %cst_10 = arith.constant 2.500000e+03 : f32
    %45 = vector.broadcast %cst_10 : f32 to vector<64x512xf32>
    %46 = arith.mulf %44, %45 : vector<64x512xf32>
    %cst_11 = arith.constant 1.000000e+00 : f32
    %47 = vector.broadcast %cst_11 : f32 to vector<64x512xf32>
    %48 = arith.addf %47, %46 : vector<64x512xf32>
    %49 = tpu.reciprocal %48 {approx = true} : vector<64x512xf32> -> vector<64x512xf32>
    %50 = arith.subf %33, %39 : vector<1x512xf32>
    %51 = vector.broadcast %50 : vector<1x512xf32> to vector<64x512xf32>
    %52 = vector.broadcast %5 : vector<64x1xf32> to vector<64x512xf32>
    %53 = arith.subf %51, %52 : vector<64x512xf32>
    %54 = arith.mulf %53, %53 : vector<64x512xf32>
    %cst_12 = arith.constant 2.500000e+03 : f32
    %55 = vector.broadcast %cst_12 : f32 to vector<64x512xf32>
    %56 = arith.mulf %54, %55 : vector<64x512xf32>
    %cst_13 = arith.constant 1.000000e+00 : f32
    %57 = vector.broadcast %cst_13 : f32 to vector<64x512xf32>
    %58 = arith.addf %57, %56 : vector<64x512xf32>
    %59 = tpu.reciprocal %58 {approx = true} : vector<64x512xf32> -> vector<64x512xf32>
    %60 = arith.subf %36, %39 : vector<1x512xf32>
    %61 = vector.broadcast %60 : vector<1x512xf32> to vector<64x512xf32>
    %62 = vector.broadcast %5 : vector<64x1xf32> to vector<64x512xf32>
    %63 = arith.subf %61, %62 : vector<64x512xf32>
    %64 = arith.mulf %63, %63 : vector<64x512xf32>
    %cst_14 = arith.constant 2.500000e+03 : f32
    %65 = vector.broadcast %cst_14 : f32 to vector<64x512xf32>
    %66 = arith.mulf %64, %65 : vector<64x512xf32>
    %cst_15 = arith.constant 1.000000e+00 : f32
    %67 = vector.broadcast %cst_15 : f32 to vector<64x512xf32>
    %68 = arith.addf %67, %66 : vector<64x512xf32>
    %69 = tpu.reciprocal %68 {approx = true} : vector<64x512xf32> -> vector<64x512xf32>
    %70 = tpu.concatenate %49, %59 in 0 : vector<64x512xf32>, vector<64x512xf32> -> vector<128x512xf32>
    %71 = vector.broadcast %30 : vector<1x512xf32> to vector<128x512xf32>
    %72 = arith.mulf %70, %71 : vector<128x512xf32>
    %73 = tpu.concatenate %59, %69 in 0 : vector<64x512xf32>, vector<64x512xf32> -> vector<128x512xf32>
    %cst_16 = arith.constant dense<0.000000e+00> : vector<128x128xf32>
    %74 = tpu.matmul %72, %73, %cst_16 {dimension_numbers = #tpu.dot_dimension_numbers<[1], [1], [0], [0], [0, 0, 1, 0], [], []>} : vector<128x512xf32>, vector<128x512xf32>, vector<128x128xf32> -> vector<128x128xf32>
    %75 = arith.addf %8, %74 : vector<128x128xf32>
    %c1_i32 = arith.constant 1 : i32
    %c0_17 = arith.constant 0 : index
    %c0_18 = arith.constant 0 : index
    %c0_19 = arith.constant 0 : index
    %c0_20 = arith.constant 0 : index
    %76 = vector.load %arg3[%c0_17, %c0_18, %c0_19, %c0_20] : memref<1x1x128x128xf32, #tpu.memory_space<vmem>>, vector<1x1x128x128xf32>
    %77 = vector.shape_cast %76 : vector<1x1x128x128xf32> to vector<128x128xf32>
    %78 = vector.shape_cast %75 : vector<128x128xf32> to vector<1x1x128x128xf32>
    tpu.vector_store %arg3[%c0_17, %c0_18, %c0_19, %c0_20], %78 {strides = array<i32>} : memref<1x1x128x128xf32, #tpu.memory_space<vmem>>, vector<1x1x128x128xf32>,
    return
  }
  func.func @transform_0(%arg0: i32, %arg1: i32) -> (i32, i32, i32, i32) {
    %c0_i32 = arith.constant 0 : i32
    %c0_i32_0 = arith.constant 0 : i32
    %c0_i32_1 = arith.constant 0 : i32
    return %arg0, %arg1, %c0_i32, %c0_i32_0 : i32, i32, i32, i32
  }
  func.func @transform_1(%arg0: i32, %arg1: i32) -> (i32, i32, i32, i32) {
    %c0_i32 = arith.constant 0 : i32
    %c0_i32_0 = arith.constant 0 : i32
    %c0_i32_1 = arith.constant 0 : i32
    return %arg0, %arg1, %c0_i32, %c0_i32_0 : i32, i32, i32, i32
  }
}

</mosaic_0001>

<llo_original>
// kernel: hist_loss.1
$region0: #{hist_loss.1}
  #allocation0 [shape = 'u32[]', space=smem, size = 0x4, offset = 0x4, fixed_abs, tag = 'smem constant byte address 0x4 - core index']
  #allocation1 [shape = 'u32[144,128]{1,0:T(1,128)}', space=vmem, size = 0x12000, scoped, tag = 'internal scratch']
  %s0 = inlined_call_operand.vmem [shape: f32[4,1,3,512], index: 0, kind: input, shape index: {}]
  %s1 = inlined_call_operand.vmem [shape: f32[4,1,128,128], index: 1, kind: output, shape index: {}]
  %s2 = sld [smem:[#allocation0]]
  $region37: #{hist_loss.1} parent=0
    _
  %s4 = ssub.s32 1, %s2
  %s5 = scalar_select 0, %s4, %s2
  loop: start=0, step=1, limit=6
  $region2: #{hist_loss.1} parent=0 // loop_pre_header
    _
  $region3: #{hist_loss.1} parent=0 // loop_header
    %s7 = sphi 0, %s11
    %p8 = scmp.ge.s32.totalorder %s7, 6
    %s14 = sphi 0, %s26
    %s15 = sphi 0, %s22
    %s16 = sphi 0, %s14
    %s17 = sphi 0, %s15
    %s18 = sphi 0, %s16
    %s19 = sphi 0, %s17
    %s31 = sphi 0, %s33
    %s34 = sphi 0, %s31
    %s35 = sphi 0, %s34
    %s51 = sphi 0, %s35
    %s59 = sphi 0, %s61
    %s62 = sphi 0, %s59
    %s63 = sphi 0, %s62
    %s79 = sphi 0, %s63
  $region4: #{hist_loss.1} parent=0 // loop_header_branch
    %10 = sbr.rel (%p8) target = $region8
  $region5: #{hist_loss.1} parent=0 // loop_body
    %s12 = ssub.s32 %s7, 1
    %s13 = ssub.s32 %s7, 2
    %s20 = sadd.s32 1, %s15
    %p21 = scmp.ge.s32.totalorder %s20, 1
    %s22 = scalar_select %p21, 0, %s20
    %s23 = sadd.s32 1, %s14
    %s24 = scalar_select %p21, %s23, %s14
    %p25 = scmp.ge.s32.totalorder %s24, 4
    %s26 = scalar_select %p25, 0, %s24
    %s27 = ssub.s32 %s14, %s26
    %s28 = ssub.s32 %s15, %s22
    %s29 = sor.u32 %s27, %s28
    %p30 = scmp.eq.s32.totalorder %s29, 0
    %s32 = sadd.s32 %s31, 1
    %s33 = scalar_select %p30, %s31, %s32
    %p36 = pneg %p30
    %p37 = scmp.eq.s32.totalorder %s7, 3
    %p38 = por %p36, %p37
    %p39 = scmp.ne.s32.totalorder %s31, %s34
    %p40 = scmp.eq.s32.totalorder %s7, 0
    %p41 = por %p39, %p40
    %p42 = scmp.ne.s32.totalorder %s31, %s34
    %p43 = scmp.eq.s32.totalorder %s12, 3
    %p44 = por %p42, %p43
    %p45 = scmp.ne.s32.totalorder %s34, %s35
    %p46 = scmp.eq.s32.totalorder %s12, 0
    %p47 = por %p45, %p46
    %p48 = scmp.ne.s32.totalorder %s34, %s35
    %p49 = scmp.eq.s32.totalorder %s13, 3
    %p50 = por %p48, %p49
    %p52 = scmp.ne.s32.totalorder %s35, %s51
    %p53 = scmp.eq.s32.totalorder %s13, 0
    %p54 = por %p52, %p53
    %s55 = ssub.s32 %s14, %s26
    %s56 = ssub.s32 %s15, %s22
    %s57 = sor.u32 %s55, %s56
    %p58 = scmp.eq.s32.totalorder %s57, 0
    %s60 = sadd.s32 %s59, 1
    %s61 = scalar_select %p58, %s59, %s60
    %p64 = pneg %p58
    %p65 = scmp.eq.s32.totalorder %s7, 3
    %p66 = por %p64, %p65
    %p67 = scmp.ne.s32.totalorder %s59, %s62
    %p68 = scmp.eq.s32.totalorder %s7, 0
    %p69 = por %p67, %p68
    %p70 = scmp.ne.s32.totalorder %s59, %s62
    %p71 = scmp.eq.s32.totalorder %s12, 3
    %p72 = por %p70, %p71
    %p73 = scmp.ne.s32.totalorder %s62, %s63
    %p74 = scmp.eq.s32.totalorder %s12, 0
    %p75 = por %p73, %p74
    %p76 = scmp.ne.s32.totalorder %s62, %s63
    %p77 = scmp.eq.s32.totalorder %s13, 3
    %p78 = por %p76, %p77
    %p80 = scmp.ne.s32.totalorder %s63, %s79
    %p81 = scmp.eq.s32.totalorder %s13, 0
    %p82 = por %p80, %p81
    %p83 = scmp.le.s32.totalorder 1, %s7
    %p84 = scmp.lt.s32.totalorder %s7, 5
    %p85 = pnand %p83, %p84
    %p86 = pneg %p85
    // Predicated region
    $region9: #{hist_loss.1} parent=5 // pred_check
      _
    $region10: #{hist_loss.1} parent=5 // pred_check_branch
      %88 = sbr.rel (%p85) target = $region12
    $region11: #{hist_loss.1} parent=5 // pred_region
      %s89 = ssub.s32 %s7, 1
    $region12: #{hist_loss.1} parent=5 // pred_fallthru
      _
    %p90 = scmp.lt.s32.totalorder %s7, 4
    // Predicated region
    $region13: #{hist_loss.1} parent=5 // pred_check
      %p91 = pneg %p90
    $region14: #{hist_loss.1} parent=5 // pred_check_branch
      %93 = sbr.rel (%p91) target = $region16
    $region15: #{hist_loss.1} parent=5 // pred_region
      // Predicated region
      $region17: #{hist_loss.1} parent=15 // pred_check
        %p94 = pneg %p41
      $region18: #{hist_loss.1} parent=15 // pred_check_branch
        %96 = sbr.rel (%p94) target = $region20
      $region19: #{hist_loss.1} parent=15 // pred_region
        %p97 = scmp.lt.s32.totalorder %s14, 3
        %s98 = scalar_select %p97, %s14, 3
        %p99 = scmp.lt.s32.totalorder %s15, 0
        %s100 = scalar_select %p99, %s15, 0
        %s101 = smul.addr %s100, 4
        %s102 = smul.addr %s98, 4
        %s103 = sadd.s32 %s101, %s102
        %s104 = smul.addr %s103, 4
        %s105 = scalar_lea.vmem %s0, %s104
      $region20: #{hist_loss.1} parent=15 // pred_fallthru
        _
    $region16: #{hist_loss.1} parent=5 // pred_fallthru
      _
    %p106 = scmp.le.s32.totalorder 1, %s7
    %p107 = scmp.lt.s32.totalorder %s7, 5
    %p108 = pnand %p106, %p107
    %p109 = pneg %p108
    // Predicated region
    $region21: #{hist_loss.1} parent=5 // pred_check
      _
    $region22: #{hist_loss.1} parent=5 // pred_check_branch
      %111 = sbr.rel (%p108) target = $region24
    $region23: #{hist_loss.1} parent=5 // pred_region
      %s112 = ssub.s32 %s7, 1
      %p113 = scmp.lt.s32.totalorder %s16, 3
      %s114 = scalar_select %p113, %s16, 3
      %p115 = scmp.lt.s32.totalorder %s17, 0
      %s116 = scalar_select %p115, %s17, 0
      %s117 = smul.addr %s116, 4
      %s118 = smul.addr %s114, 4
      %s119 = sadd.s32 %s117, %s118
      %s120 = smul.addr %s119, 4
      %s121 = scalar_lea.vmem %s0, %s120
      %p122 = pneg %p47
      %p123 = pneg %p44
      %p124 = pneg %p75
      %p125 = pneg %p72
      %p126 = scmp.lt.s32.totalorder %s16, 3
      %s127 = scalar_select %p126, %s16, 3
      %p128 = scmp.lt.s32.totalorder %s17, 0
      %s129 = scalar_select %p128, %s17, 0
      %s130 = smul.addr %s129, 16
      %s131 = smul.addr %s127, 16
      %s132 = sadd.s32 %s130, %s131
      %s133 = smul.addr %s132, 8
      %s134 = scalar_lea.vmem %s1, %s133
      %p135 = scmp.lt.s32.totalorder %s16, 3
      %s136 = scalar_select %p135, %s16, 3
      %p137 = scmp.lt.s32.totalorder %s17, 0
      %s138 = scalar_select %p137, %s17, 0
      %s139 = smul.addr %s138, 4
      %s140 = smul.addr %s136, 4
      %s141 = sadd.s32 %s139, %s140
      %s142 = smul.addr %s141, 4
      %s143 = scalar_lea.vmem %s0, %s142
      %p144 = scmp.lt.s32.totalorder %s16, 3
      %s145 = scalar_select %p144, %s16, 3
      %p146 = scmp.lt.s32.totalorder %s17, 0
      %s147 = scalar_select %p146, %s17, 0
      %s148 = smul.addr %s147, 16
      %s149 = smul.addr %s145, 16
      %s150 = sadd.s32 %s148, %s149
      %s151 = smul.addr %s150, 8
      %s152 = scalar_lea.vmem %s1, %s151
      %v153 = vlaneseq
      %v154 = vshrl.u32 %v153, 7
      %v155 = vadd.s32 %v154, 8
      %v156 = vadd.s32 %v154, 16
      %v157 = vadd.s32 %v154, 24
      %v158 = vadd.s32 %v154, 32
      %v159 = vadd.s32 %v154, 40
      %v160 = vadd.s32 %v154, 48
      %v161 = vadd.s32 %v154, 56
      %v162 = vcvt.s32.f32 %v154
      %v163 = vcvt.s32.f32 %v155
      %v164 = vcvt.s32.f32 %v156
      %v165 = vcvt.s32.f32 %v157
      %v166 = vcvt.s32.f32 %v158
      %v167 = vcvt.s32.f32 %v159
      %v168 = vcvt.s32.f32 %v160
      %v169 = vcvt.s32.f32 %v161
      %v170 = vmul.f32 %v162, 0.0952381
      %v171 = vmul.f32 %v163, 0.0952381
      %v172 = vmul.f32 %v164, 0.0952381
      %v173 = vmul.f32 %v165, 0.0952381
      %v174 = vmul.f32 %v166, 0.0952381
      %v175 = vmul.f32 %v167, 0.0952381
      %v176 = vmul.f32 %v168, 0.0952381
      %v177 = vmul.f32 %v169, 0.0952381
      %v178 = vadd.f32 %v170, -3.0
      %v179 = vadd.f32 %v171, -3.0
      %v180 = vadd.f32 %v172, -3.0
      %v181 = vadd.f32 %v173, -3.0
      %v182 = vadd.f32 %v174, -3.0
      %v183 = vadd.f32 %v175, -3.0
      %v184 = vadd.f32 %v176, -3.0
      %v185 = vadd.f32 %v177, -3.0
      %s186 = smul.u32 %s17, 512
      %v187 = vlaneseq
      %v188 = vand.u32 %v187, 127
      %v189 = vadd.s32 %v188, 128
      %v190 = vadd.s32 %v188, 256
      %v191 = vadd.s32 %v188, 384
      %v192 = vld [vmem:[%s143] sm:$0x77]
      %v193 = vld [vmem:[%s143 + $0x8] sm:$0x77]
      %v194 = vmul.f32 %v192, %v192
      %v195 = vmul.f32 %v193, %v193
      %v198 = vrot.slane %v194, 5
      %v199 = vrot.slane %v198, 4
      %v200 = vrot.slane %v195, 5
      %v201 = vrot.slane %v200, 4
      %v204 = vadd.f32 %v194, %v199
      %v205 = vadd.f32 %v195, %v201
      %v206 = vrot.slane %v194, 6
      %v207 = vrot.slane %v206, 4
      %v208 = vrot.slane %v195, 6
      %v209 = vrot.slane %v208, 4
      %v212 = vadd.f32 %v204, %v207
      %v213 = vadd.f32 %v205, %v209
      %v214 = vadd.f32 %v212, 1e-06
      %v215 = vadd.f32 %v213, 1e-06
      %v216 = vrsqrt.pop %v214
      %v217 = vmul.f32 %v214, %v216
      %vm218 = vcmp.eq.f32.partialorder %v214, inf
      %v219 = vsel %vm218, %v214, %v217
      %vm220 = vcmp.eq.f32.partialorder %v214, 0.0
      %v221 = vand.u32 %v214, 2147483648
      %v222 = vsel %vm220, %v221, %v219
      %v223 = vrsqrt.pop %v215
      %v224 = vmul.f32 %v215, %v223
      %vm225 = vcmp.eq.f32.partialorder %v215, inf
      %v226 = vsel %vm225, %v215, %v224
      %vm227 = vcmp.eq.f32.partialorder %v215, 0.0
      %v228 = vand.u32 %v215, 2147483648
      %v229 = vsel %vm227, %v228, %v226
      %v230 = vstv %s186
      %v231 = vadd.s32 %v230, %v188
      %v232 = vadd.s32 %v230, %v189
      %v233 = vadd.s32 %v230, %v190
      %v234 = vadd.s32 %v230, %v191
      %vm235 = vcmp.lt.s32.totalorder %v231, 256
      %vm236 = vcmp.lt.s32.totalorder %v232, 256
      %vm237 = vcmp.lt.s32.totalorder %v233, 256
      %vm238 = vcmp.lt.s32.totalorder %v234, 256
      %v241 = vlaneseq
      %v242 = vshrl.u32 %v241, 7
      %v243 = vsub.s32 0, %v242
      %v244 = vrot.slane %v222, %v243
      %v245 = vlaneseq
      %v246 = vshrl.u32 %v245, 7
      %v247 = vsub.s32 4, %v246
      %v248 = vrot.slane %v222, %v247
      %v249 = vlaneseq
      %v250 = vshrl.u32 %v249, 7
      %v251 = vsub.s32 0, %v250
      %v252 = vrot.slane %v229, %v251
      %v253 = vlaneseq
      %v254 = vshrl.u32 %v253, 7
      %v255 = vsub.s32 4, %v254
      %v256 = vrot.slane %v229, %v255
      %v261 = vsel %vm235, %v244, 0.0
      %v262 = vsel %vm236, %v248, 0.0
      %v263 = vsel %vm237, %v252, 0.0
      %v264 = vsel %vm238, %v256, 0.0
      %v265 = vadd.f32 %v192, 1e-06
      %v266 = vadd.f32 %v193, 1e-06
      %v267 = vlog2.pop %v265
      %v268 = vmul.f32 %v267, 0.6931472
      %v269 = vlog2.pop %v266
      %v270 = vmul.f32 %v269, 0.6931472
      %v273 = vrot.slane %v268, 5
      %v274 = vrot.slane %v273, 4
      %v275 = vrot.slane %v270, 5
      %v276 = vrot.slane %v275, 4
      %v279 = vsub.f32 %v268, %v274
      %v280 = vsub.f32 %v270, %v276
      %v283 = vlaneseq
      %v284 = vshrl.u32 %v283, 7
      %v285 = vsub.s32 0, %v284
      %v286 = vrot.slane %v279, %v285
      %v287 = vlaneseq
      %v288 = vshrl.u32 %v287, 7
      %v289 = vsub.s32 4, %v288
      %v290 = vrot.slane %v279, %v289
      %v291 = vlaneseq
      %v292 = vshrl.u32 %v291, 7
      %v293 = vsub.s32 0, %v292
      %v294 = vrot.slane %v280, %v293
      %v295 = vlaneseq
      %v296 = vshrl.u32 %v295, 7
      %v297 = vsub.s32 4, %v296
      %v298 = vrot.slane %v280, %v297
      %v303 = vlaneseq
      %v304 = vshrl.u32 %v303, 7
      %v305 = vsub.s32 0, %v304
      %v306 = vrot.slane %v286, %v305
      %v307 = vlaneseq
      %v308 = vshrl.u32 %v307, 7
      %v309 = vsub.s32 0, %v308
      %v310 = vrot.slane %v290, %v309
      %v311 = vlaneseq
      %v312 = vshrl.u32 %v311, 7
      %v313 = vsub.s32 0, %v312
      %v314 = vrot.slane %v294, %v313
      %v315 = vlaneseq
      %v316 = vshrl.u32 %v315, 7
      %v317 = vsub.s32 0, %v316
      %v318 = vrot.slane %v298, %v317
      %v319 = vsub.f32 %v306, %v178
      %v320 = vsub.f32 %v310, %v178
      %v321 = vsub.f32 %v314, %v178
      %v322 = vsub.f32 %v318, %v178
      %v323 = vsub.f32 %v306, %v179
      %v324 = vsub.f32 %v310, %v179
      %v325 = vsub.f32 %v314, %v179
      %v326 = vsub.f32 %v318, %v179
      %v327 = vsub.f32 %v306, %v180
      %v328 = vsub.f32 %v310, %v180
      %v329 = vsub.f32 %v314, %v180
      %v330 = vsub.f32 %v318, %v180
      %v331 = vsub.f32 %v306, %v181
      %v332 = vsub.f32 %v310, %v181
      %v333 = vsub.f32 %v314, %v181
      %v334 = vsub.f32 %v318, %v181
      %v335 = vsub.f32 %v306, %v182
      %v336 = vsub.f32 %v310, %v182
      %v337 = vsub.f32 %v314, %v182
      %v338 = vsub.f32 %v318, %v182
      %v339 = vsub.f32 %v306, %v183
      %v340 = vsub.f32 %v310, %v183
      %v341 = vsub.f32 %v314, %v183
      %v342 = vsub.f32 %v318, %v183
      %v343 = vsub.f32 %v306, %v184
      %v344 = vsub.f32 %v310, %v184
      %v345 = vsub.f32 %v314, %v184
      %v346 = vsub.f32 %v318, %v184
      %v347 = vsub.f32 %v306, %v185
      %v348 = vsub.f32 %v310, %v185
      %v349 = vsub.f32 %v314, %v185
      %v350 = vsub.f32 %v318, %v185
      %v351 = vmul.f32 %v319, %v319
      %v352 = vmul.f32 %v320, %v320
      %v353 = vmul.f32 %v321, %v321
      %v354 = vmul.f32 %v322, %v322
      %v355 = vmul.f32 %v323, %v323
      %v356 = vmul.f32 %v324, %v324
      %v357 = vmul.f32 %v325, %v325
      %v358 = vmul.f32 %v326, %v326
      %v359 = vmul.f32 %v327, %v327
      %v360 = vmul.f32 %v328, %v328
      %v361 = vmul.f32 %v329, %v329
      %v362 = vmul.f32 %v330, %v330
      %v363 = vmul.f32 %v331, %v331
      %v364 = vmul.f32 %v332, %v332
      %v365 = vmul.f32 %v333, %v333
      %v366 = vmul.f32 %v334, %v334
      %v367 = vmul.f32 %v335, %v335
      %v368 = vmul.f32 %v336, %v336
      %v369 = vmul.f32 %v337, %v337
      %v370 = vmul.f32 %v338, %v338
      %v371 = vmul.f32 %v339, %v339
      %v372 = vmul.f32 %v340, %v340
      %v373 = vmul.f32 %v341, %v341
      %v374 = vmul.f32 %v342, %v342
      %v375 = vmul.f32 %v343, %v343
      %v376 = vmul.f32 %v344, %v344
      %v377 = vmul.f32 %v345, %v345
      %v378 = vmul.f32 %v346, %v346
      %v379 = vmul.f32 %v347, %v347
      %v380 = vmul.f32 %v348, %v348
      %v381 = vmul.f32 %v349, %v349
      %v382 = vmul.f32 %v350, %v350
      %v383 = vmul.f32 %v351, 2500.0
      %v384 = vmul.f32 %v352, 2500.0
      %v385 = vmul.f32 %v353, 2500.0
      %v386 = vmul.f32 %v354, 2500.0
      %v387 = vmul.f32 %v355, 2500.0
      %v388 = vmul.f32 %v356, 2500.0
      %v389 = vmul.f32 %v357, 2500.0
      %v390 = vmul.f32 %v358, 2500.0
      %v391 = vmul.f32 %v359, 2500.0
      %v392 = vmul.f32 %v360, 2500.0
      %v393 = vmul.f32 %v361, 2500.0
      %v394 = vmul.f32 %v362, 2500.0
      %v395 = vmul.f32 %v363, 2500.0
      %v396 = vmul.f32 %v364, 2500.0
      %v397 = vmul.f32 %v365, 2500.0
      %v398 = vmul.f32 %v366, 2500.0
      %v399 = vmul.f32 %v367, 2500.0
      %v400 = vmul.f32 %v368, 2500.0
      %v401 = vmul.f32 %v369, 2500.0
      %v402 = vmul.f32 %v370, 2500.0
      %v403 = vmul.f32 %v371, 2500.0
      %v404 = vmul.f32 %v372, 2500.0
      %v405 = vmul.f32 %v373, 2500.0
      %v406 = vmul.f32 %v374, 2500.0
      %v407 = vmul.f32 %v375, 2500.0
      %v408 = vmul.f32 %v376, 2500.0
      %v409 = vmul.f32 %v377, 2500.0
      %v410 = vmul.f32 %v378, 2500.0
      %v411 = vmul.f32 %v379, 2500.0
      %v412 = vmul.f32 %v380, 2500.0
      %v413 = vmul.f32 %v381, 2500.0
      %v414 = vmul.f32 %v382, 2500.0
      %v415 = vadd.f32 %v383, 1.0
      %v416 = vadd.f32 %v384, 1.0
      %v417 = vadd.f32 %v385, 1.0
      %v418 = vadd.f32 %v386, 1.0
      %v419 = vadd.f32 %v387, 1.0
      %v420 = vadd.f32 %v388, 1.0
      %v421 = vadd.f32 %v389, 1.0
      %v422 = vadd.f32 %v390, 1.0
      %v423 = vadd.f32 %v391, 1.0
      %v424 = vadd.f32 %v392, 1.0
      %v425 = vadd.f32 %v393, 1.0
      %v426 = vadd.f32 %v394, 1.0
      %v427 = vadd.f32 %v395, 1.0
      %v428 = vadd.f32 %v396, 1.0
      %v429 = vadd.f32 %v397, 1.0
      %v430 = vadd.f32 %v398, 1.0
      %v431 = vadd.f32 %v399, 1.0
      %v432 = vadd.f32 %v400, 1.0
      %v433 = vadd.f32 %v401, 1.0
      %v434 = vadd.f32 %v402, 1.0
      %v435 = vadd.f32 %v403, 1.0
      %v436 = vadd.f32 %v404, 1.0
      %v437 = vadd.f32 %v405, 1.0
      %v438 = vadd.f32 %v406, 1.0
      %v439 = vadd.f32 %v407, 1.0
      %v440 = vadd.f32 %v408, 1.0
      %v441 = vadd.f32 %v409, 1.0
      %v442 = vadd.f32 %v410, 1.0
      %v443 = vadd.f32 %v411, 1.0
      %v444 = vadd.f32 %v412, 1.0
      %v445 = vadd.f32 %v413, 1.0
      %v446 = vadd.f32 %v414, 1.0
      %v447 = vrcp.pop %v415
      %v448 = vrcp.pop %v416
      %v449 = vrcp.pop %v417
      %v450 = vrcp.pop %v418
      %v451 = vrcp.pop %v419
      %v452 = vrcp.pop %v420
      %v453 = vrcp.pop %v421
      %v454 = vrcp.pop %v422
      %v455 = vrcp.pop %v423
      %v456 = vrcp.pop %v424
      %v457 = vrcp.pop %v425
      %v458 = vrcp.pop %v426
      %v459 = vrcp.pop %v427
      %v460 = vrcp.pop %v428
      %v461 = vrcp.pop %v429
      %v462 = vrcp.pop %v430
      %v463 = vrcp.pop %v431
      %v464 = vrcp.pop %v432
      %v465 = vrcp.pop %v433
      %v466 = vrcp.pop %v434
      %v467 = vrcp.pop %v435
      %v468 = vrcp.pop %v436
      %v469 = vrcp.pop %v437
      %v470 = vrcp.pop %v438
      %v471 = vrcp.pop %v439
      %v472 = vrcp.pop %v440
      %v473 = vrcp.pop %v441
      %v474 = vrcp.pop %v442
      %v475 = vrcp.pop %v443
      %v476 = vrcp.pop %v444
      %v477 = vrcp.pop %v445
      %v478 = vrcp.pop %v446
      %v479 = vrot.slane %v268, 6
      %v480 = vrot.slane %v479, 4
      %v481 = vrot.slane %v270, 6
      %v482 = vrot.slane %v481, 4
      %v485 = vsub.f32 %v268, %v480
      %v486 = vsub.f32 %v270, %v482
      %v489 = vlaneseq
      %v490 = vshrl.u32 %v489, 7
      %v491 = vsub.s32 0, %v490
      %v492 = vrot.slane %v485, %v491
      %v493 = vlaneseq
      %v494 = vshrl.u32 %v493, 7
      %v495 = vsub.s32 4, %v494
      %v496 = vrot.slane %v485, %v495
      %v497 = vlaneseq
      %v498 = vshrl.u32 %v497, 7
      %v499 = vsub.s32 0, %v498
      %v500 = vrot.slane %v486, %v499
      %v501 = vlaneseq
      %v502 = vshrl.u32 %v501, 7
      %v503 = vsub.s32 4, %v502
      %v504 = vrot.slane %v486, %v503
      %v509 = vlaneseq
      %v510 = vshrl.u32 %v509, 7
      %v511 = vsub.s32 0, %v510
      %v512 = vrot.slane %v492, %v511
      %v513 = vlaneseq
      %v514 = vshrl.u32 %v513, 7
      %v515 = vsub.s32 0, %v514
      %v516 = vrot.slane %v496, %v515
      %v517 = vlaneseq
      %v518 = vshrl.u32 %v517, 7
      %v519 = vsub.s32 0, %v518
      %v520 = vrot.slane %v500, %v519
      %v521 = vlaneseq
      %v522 = vshrl.u32 %v521, 7
      %v523 = vsub.s32 0, %v522
      %v524 = vrot.slane %v504, %v523
      %v525 = vsub.f32 %v512, %v178
      %v526 = vsub.f32 %v516, %v178
      %v527 = vsub.f32 %v520, %v178
      %v528 = vsub.f32 %v524, %v178
      %v529 = vsub.f32 %v512, %v179
      %v530 = vsub.f32 %v516, %v179
      %v531 = vsub.f32 %v520, %v179
      %v532 = vsub.f32 %v524, %v179
      %v533 = vsub.f32 %v512, %v180
      %v534 = vsub.f32 %v516, %v180
      %v535 = vsub.f32 %v520, %v180
      %v536 = vsub.f32 %v524, %v180
      %v537 = vsub.f32 %v512, %v181
      %v538 = vsub.f32 %v516, %v181
      %v539 = vsub.f32 %v520, %v181
      %v540 = vsub.f32 %v524, %v181
      %v541 = vsub.f32 %v512, %v182
      %v542 = vsub.f32 %v516, %v182
      %v543 = vsub.f32 %v520, %v182
      %v544 = vsub.f32 %v524, %v182
      %v545 = vsub.f32 %v512, %v183
      %v546 = vsub.f32 %v516, %v183
      %v547 = vsub.f32 %v520, %v183
      %v548 = vsub.f32 %v524, %v183
      %v549 = vsub.f32 %v512, %v184
      %v550 = vsub.f32 %v516, %v184
      %v551 = vsub.f32 %v520, %v184
      %v552 = vsub.f32 %v524, %v184
      %v553 = vsub.f32 %v512, %v185
      %v554 = vsub.f32 %v516, %v185
      %v555 = vsub.f32 %v520, %v185
      %v556 = vsub.f32 %v524, %v185
      %v557 = vmul.f32 %v525, %v525
      %v558 = vmul.f32 %v526, %v526
      %v559 = vmul.f32 %v527, %v527
      %v560 = vmul.f32 %v528, %v528
      %v561 = vmul.f32 %v529, %v529
      %v562 = vmul.f32 %v530, %v530
      %v563 = vmul.f32 %v531, %v531
      %v564 = vmul.f32 %v532, %v532
      %v565 = vmul.f32 %v533, %v533
      %v566 = vmul.f32 %v534, %v534
      %v567 = vmul.f32 %v535, %v535
      %v568 = vmul.f32 %v536, %v536
      %v569 = vmul.f32 %v537, %v537
      %v570 = vmul.f32 %v538, %v538
      %v571 = vmul.f32 %v539, %v539
      %v572 = vmul.f32 %v540, %v540
      %v573 = vmul.f32 %v541, %v541
      %v574 = vmul.f32 %v542, %v542
      %v575 = vmul.f32 %v543, %v543
      %v576 = vmul.f32 %v544, %v544
      %v577 = vmul.f32 %v545, %v545
      %v578 = vmul.f32 %v546, %v546
      %v579 = vmul.f32 %v547, %v547
      %v580 = vmul.f32 %v548, %v548
      %v581 = vmul.f32 %v549, %v549
      %v582 = vmul.f32 %v550, %v550
      %v583 = vmul.f32 %v551, %v551
      %v584 = vmul.f32 %v552, %v552
      %v585 = vmul.f32 %v553, %v553
      %v586 = vmul.f32 %v554, %v554
      %v587 = vmul.f32 %v555, %v555
      %v588 = vmul.f32 %v556, %v556
      %v589 = vmul.f32 %v557, 2500.0
      %v590 = vmul.f32 %v558, 2500.0
      %v591 = vmul.f32 %v559, 2500.0
      %v592 = vmul.f32 %v560, 2500.0
      %v593 = vmul.f32 %v561, 2500.0
      %v594 = vmul.f32 %v562, 2500.0
      %v595 = vmul.f32 %v563, 2500.0
      %v596 = vmul.f32 %v564, 2500.0
      %v597 = vmul.f32 %v565, 2500.0
      %v598 = vmul.f32 %v566, 2500.0
      %v599 = vmul.f32 %v567, 2500.0
      %v600 = vmul.f32 %v568, 2500.0
      %v601 = vmul.f32 %v569, 2500.0
      %v602 = vmul.f32 %v570, 2500.0
      %v603 = vmul.f32 %v571, 2500.0
      %v604 = vmul.f32 %v572, 2500.0
      %v605 = vmul.f32 %v573, 2500.0
      %v606 = vmul.f32 %v574, 2500.0
      %v607 = vmul.f32 %v575, 2500.0
      %v608 = vmul.f32 %v576, 2500.0
      %v609 = vmul.f32 %v577, 2500.0
      %v610 = vmul.f32 %v578, 2500.0
      %v611 = vmul.f32 %v579, 2500.0
      %v612 = vmul.f32 %v580, 2500.0
      %v613 = vmul.f32 %v581, 2500.0
      %v614 = vmul.f32 %v582, 2500.0
      %v615 = vmul.f32 %v583, 2500.0
      %v616 = vmul.f32 %v584, 2500.0
      %v617 = vmul.f32 %v585, 2500.0
      %v618 = vmul.f32 %v586, 2500.0
      %v619 = vmul.f32 %v587, 2500.0
      %v620 = vmul.f32 %v588, 2500.0
      %v621 = vadd.f32 %v589, 1.0
      %v622 = vadd.f32 %v590, 1.0
      %v623 = vadd.f32 %v591, 1.0
      %v624 = vadd.f32 %v592, 1.0
      %v625 = vadd.f32 %v593, 1.0
      %v626 = vadd.f32 %v594, 1.0
      %v627 = vadd.f32 %v595, 1.0
      %v628 = vadd.f32 %v596, 1.0
      %v629 = vadd.f32 %v597, 1.0
      %v630 = vadd.f32 %v598, 1.0
      %v631 = vadd.f32 %v599, 1.0
      %v632 = vadd.f32 %v600, 1.0
      %v633 = vadd.f32 %v601, 1.0
      %v634 = vadd.f32 %v602, 1.0
      %v635 = vadd.f32 %v603, 1.0
      %v636 = vadd.f32 %v604, 1.0
      %v637 = vadd.f32 %v605, 1.0
      %v638 = vadd.f32 %v606, 1.0
      %v639 = vadd.f32 %v607, 1.0
      %v640 = vadd.f32 %v608, 1.0
      %v641 = vadd.f32 %v609, 1.0
      %v642 = vadd.f32 %v610, 1.0
      %v643 = vadd.f32 %v611, 1.0
      %v644 = vadd.f32 %v612, 1.0
      %v645 = vadd.f32 %v613, 1.0
      %v646 = vadd.f32 %v614, 1.0
      %v647 = vadd.f32 %v615, 1.0
      %v648 = vadd.f32 %v616, 1.0
      %v649 = vadd.f32 %v617, 1.0
      %v650 = vadd.f32 %v618, 1.0
      %v651 = vadd.f32 %v619, 1.0
      %v652 = vadd.f32 %v620, 1.0
      %v653 = vrcp.pop %v621
      %v654 = vrcp.pop %v622
      %v655 = vrcp.pop %v623
      %v656 = vrcp.pop %v624
      %v657 = vrcp.pop %v625
      %v658 = vrcp.pop %v626
      %v659 = vrcp.pop %v627
      %v660 = vrcp.pop %v628
      %v661 = vrcp.pop %v629
      %v662 = vrcp.pop %v630
      %v663 = vrcp.pop %v631
      %v664 = vrcp.pop %v632
      %v665 = vrcp.pop %v633
      %v666 = vrcp.pop %v634
      %v667 = vrcp.pop %v635
      %v668 = vrcp.pop %v636
      %v669 = vrcp.pop %v637
      %v670 = vrcp.pop %v638
      %v671 = vrcp.pop %v639
      %v672 = vrcp.pop %v640
      %v673 = vrcp.pop %v641
      %v674 = vrcp.pop %v642
      %v675 = vrcp.pop %v643
      %v676 = vrcp.pop %v644
      %v677 = vrcp.pop %v645
      %v678 = vrcp.pop %v646
      %v679 = vrcp.pop %v647
      %v680 = vrcp.pop %v648
      %v681 = vrcp.pop %v649
      %v682 = vrcp.pop %v650
      %v683 = vrcp.pop %v651
      %v684 = vrcp.pop %v652
      %v685 = vlaneseq
      %v686 = vshrl.u32 %v685, 7
      %v687 = vsub.s32 1, %v686
      %v688 = vrot.slane %v279, %v687
      %v689 = vlaneseq
      %v690 = vshrl.u32 %v689, 7
      %v691 = vsub.s32 5, %v690
      %v692 = vrot.slane %v279, %v691
      %v693 = vlaneseq
      %v694 = vshrl.u32 %v693, 7
      %v695 = vsub.s32 1, %v694
      %v696 = vrot.slane %v280, %v695
      %v697 = vlaneseq
      %v698 = vshrl.u32 %v697, 7
      %v699 = vsub.s32 5, %v698
      %v700 = vrot.slane %v280, %v699
      %v705 = vlaneseq
      %v706 = vshrl.u32 %v705, 7
      %v707 = vsub.s32 1, %v706
      %v708 = vrot.slane %v688, %v707
      %v709 = vlaneseq
      %v710 = vshrl.u32 %v709, 7
      %v711 = vsub.s32 1, %v710
      %v712 = vrot.slane %v692, %v711
      %v713 = vlaneseq
      %v714 = vshrl.u32 %v713, 7
      %v715 = vsub.s32 1, %v714
      %v716 = vrot.slane %v696, %v715
      %v717 = vlaneseq
      %v718 = vshrl.u32 %v717, 7
      %v719 = vsub.s32 1, %v718
      %v720 = vrot.slane %v700, %v719
      %v721 = vsub.f32 %v708, %v178
      %v722 = vsub.f32 %v712, %v178
      %v723 = vsub.f32 %v716, %v178
      %v724 = vsub.f32 %v720, %v178
      %v725 = vsub.f32 %v708, %v179
      %v726 = vsub.f32 %v712, %v179
      %v727 = vsub.f32 %v716, %v179
      %v728 = vsub.f32 %v720, %v179
      %v729 = vsub.f32 %v708, %v180
      %v730 = vsub.f32 %v712, %v180
      %v731 = vsub.f32 %v716, %v180
      %v732 = vsub.f32 %v720, %v180
      %v733 = vsub.f32 %v708, %v181
      %v734 = vsub.f32 %v712, %v181
      %v735 = vsub.f32 %v716, %v181
      %v736 = vsub.f32 %v720, %v181
      %v737 = vsub.f32 %v708, %v182
      %v738 = vsub.f32 %v712, %v182
      %v739 = vsub.f32 %v716, %v182
      %v740 = vsub.f32 %v720, %v182
      %v741 = vsub.f32 %v708, %v183
      %v742 = vsub.f32 %v712, %v183
      %v743 = vsub.f32 %v716, %v183
      %v744 = vsub.f32 %v720, %v183
      %v745 = vsub.f32 %v708, %v184
      %v746 = vsub.f32 %v712, %v184
      %v747 = vsub.f32 %v716, %v184
      %v748 = vsub.f32 %v720, %v184
      %v749 = vsub.f32 %v708, %v185
      %v750 = vsub.f32 %v712, %v185
      %v751 = vsub.f32 %v716, %v185
      %v752 = vsub.f32 %v720, %v185
      %v753 = vmul.f32 %v721, %v721
      %v754 = vmul.f32 %v722, %v722
      %v755 = vmul.f32 %v723, %v723
      %v756 = vmul.f32 %v724, %v724
      %v757 = vmul.f32 %v725, %v725
      %v758 = vmul.f32 %v726, %v726
      %v759 = vmul.f32 %v727, %v727
      %v760 = vmul.f32 %v728, %v728
      %v761 = vmul.f32 %v729, %v729
      %v762 = vmul.f32 %v730, %v730
      %v763 = vmul.f32 %v731, %v731
      %v764 = vmul.f32 %v732, %v732
      %v765 = vmul.f32 %v733, %v733
      %v766 = vmul.f32 %v734, %v734
      %v767 = vmul.f32 %v735, %v735
      %v768 = vmul.f32 %v736, %v736
      %v769 = vmul.f32 %v737, %v737
      %v770 = vmul.f32 %v738, %v738
      %v771 = vmul.f32 %v739, %v739
      %v772 = vmul.f32 %v740, %v740
      %v773 = vmul.f32 %v741, %v741
      %v774 = vmul.f32 %v742, %v742
      %v775 = vmul.f32 %v743, %v743
      %v776 = vmul.f32 %v744, %v744
      %v777 = vmul.f32 %v745, %v745
      %v778 = vmul.f32 %v746, %v746
      %v779 = vmul.f32 %v747, %v747
      %v780 = vmul.f32 %v748, %v748
      %v781 = vmul.f32 %v749, %v749
      %v782 = vmul.f32 %v750, %v750
      %v783 = vmul.f32 %v751, %v751
      %v784 = vmul.f32 %v752, %v752
      %v785 = vmul.f32 %v753, 2500.0
      %v786 = vmul.f32 %v754, 2500.0
      %v787 = vmul.f32 %v755, 2500.0
      %v788 = vmul.f32 %v756, 2500.0
      %v789 = vmul.f32 %v757, 2500.0
      %v790 = vmul.f32 %v758, 2500.0
      %v791 = vmul.f32 %v759, 2500.0
      %v792 = vmul.f32 %v760, 2500.0
      %v793 = vmul.f32 %v761, 2500.0
      %v794 = vmul.f32 %v762, 2500.0
      %v795 = vmul.f32 %v763, 2500.0
      %v796 = vmul.f32 %v764, 2500.0
      %v797 = vmul.f32 %v765, 2500.0
      %v798 = vmul.f32 %v766, 2500.0
      %v799 = vmul.f32 %v767, 2500.0
      %v800 = vmul.f32 %v768, 2500.0
      %v801 = vmul.f32 %v769, 2500.0
      %v802 = vmul.f32 %v770, 2500.0
      %v803 = vmul.f32 %v771, 2500.0
      %v804 = vmul.f32 %v772, 2500.0
      %v805 = vmul.f32 %v773, 2500.0
      %v806 = vmul.f32 %v774, 2500.0
      %v807 = vmul.f32 %v775, 2500.0
      %v808 = vmul.f32 %v776, 2500.0
      %v809 = vmul.f32 %v777, 2500.0
      %v810 = vmul.f32 %v778, 2500.0
      %v811 = vmul.f32 %v779, 2500.0
      %v812 = vmul.f32 %v780, 2500.0
      %v813 = vmul.f32 %v781, 2500.0
      %v814 = vmul.f32 %v782, 2500.0
      %v815 = vmul.f32 %v783, 2500.0
      %v816 = vmul.f32 %v784, 2500.0
      %v817 = vadd.f32 %v785, 1.0
      %v818 = vadd.f32 %v786, 1.0
      %v819 = vadd.f32 %v787, 1.0
      %v820 = vadd.f32 %v788, 1.0
      %v821 = vadd.f32 %v789, 1.0
      %v822 = vadd.f32 %v790, 1.0
      %v823 = vadd.f32 %v791, 1.0
      %v824 = vadd.f32 %v792, 1.0
      %v825 = vadd.f32 %v793, 1.0
      %v826 = vadd.f32 %v794, 1.0
      %v827 = vadd.f32 %v795, 1.0
      %v828 = vadd.f32 %v796, 1.0
      %v829 = vadd.f32 %v797, 1.0
      %v830 = vadd.f32 %v798, 1.0
      %v831 = vadd.f32 %v799, 1.0
      %v832 = vadd.f32 %v800, 1.0
      %v833 = vadd.f32 %v801, 1.0
      %v834 = vadd.f32 %v802, 1.0
      %v835 = vadd.f32 %v803, 1.0
      %v836 = vadd.f32 %v804, 1.0
      %v837 = vadd.f32 %v805, 1.0
      %v838 = vadd.f32 %v806, 1.0
      %v839 = vadd.f32 %v807, 1.0
      %v840 = vadd.f32 %v808, 1.0
      %v841 = vadd.f32 %v809, 1.0
      %v842 = vadd.f32 %v810, 1.0
      %v843 = vadd.f32 %v811, 1.0
      %v844 = vadd.f32 %v812, 1.0
      %v845 = vadd.f32 %v813, 1.0
      %v846 = vadd.f32 %v814, 1.0
      %v847 = vadd.f32 %v815, 1.0
      %v848 = vadd.f32 %v816, 1.0
      %v849 = vrcp.pop %v817
      %v850 = vrcp.pop %v818
      %v851 = vrcp.pop %v819
      %v852 = vrcp.pop %v820
      %v853 = vrcp.pop %v821
      %v854 = vrcp.pop %v822
      %v855 = vrcp.pop %v823
      %v856 = vrcp.pop %v824
      %v857 = vrcp.pop %v825
      %v858 = vrcp.pop %v826
      %v859 = vrcp.pop %v827
      %v860 = vrcp.pop %v828
      %v861 = vrcp.pop %v829
      %v862 = vrcp.pop %v830
      %v863 = vrcp.pop %v831
      %v864 = vrcp.pop %v832
      %v865 = vrcp.pop %v833
      %v866 = vrcp.pop %v834
      %v867 = vrcp.pop %v835
      %v868 = vrcp.pop %v836
      %v869 = vrcp.pop %v837
      %v870 = vrcp.pop %v838
      %v871 = vrcp.pop %v839
      %v872 = vrcp.pop %v840
      %v873 = vrcp.pop %v841
      %v874 = vrcp.pop %v842
      %v875 = vrcp.pop %v843
      %v876 = vrcp.pop %v844
      %v877 = vrcp.pop %v845
      %v878 = vrcp.pop %v846
      %v879 = vrcp.pop %v847
      %v880 = vrcp.pop %v848
      %v881 = vlaneseq
      %v882 = vshrl.u32 %v881, 7
      %v883 = vsub.s32 0, %v882
      %v884 = vrot.slane %v261, %v883
      %v885 = vlaneseq
      %v886 = vshrl.u32 %v885, 7
      %v887 = vsub.s32 0, %v886
      %v888 = vrot.slane %v262, %v887
      %v889 = vlaneseq
      %v890 = vshrl.u32 %v889, 7
      %v891 = vsub.s32 0, %v890
      %v892 = vrot.slane %v263, %v891
      %v893 = vlaneseq
      %v894 = vshrl.u32 %v893, 7
      %v895 = vsub.s32 0, %v894
      %v896 = vrot.slane %v264, %v895
      %v897 = vmul.f32 %v447, %v884
      %v898 = vmul.f32 %v448, %v888
      %v899 = vmul.f32 %v449, %v892
      %v900 = vmul.f32 %v450, %v896
      %v901 = vmul.f32 %v451, %v884
      %v902 = vmul.f32 %v452, %v888
      %v903 = vmul.f32 %v453, %v892
      %v904 = vmul.f32 %v454, %v896
      %v905 = vmul.f32 %v455, %v884
      %v906 = vmul.f32 %v456, %v888
      %v907 = vmul.f32 %v457, %v892
      %v908 = vmul.f32 %v458, %v896
      %v909 = vmul.f32 %v459, %v884
      %v910 = vmul.f32 %v460, %v888
      %v911 = vmul.f32 %v461, %v892
      %v912 = vmul.f32 %v462, %v896
      %v913 = vmul.f32 %v463, %v884
      %v914 = vmul.f32 %v464, %v888
      %v915 = vmul.f32 %v465, %v892
      %v916 = vmul.f32 %v466, %v896
      %v917 = vmul.f32 %v467, %v884
      %v918 = vmul.f32 %v468, %v888
      %v919 = vmul.f32 %v469, %v892
      %v920 = vmul.f32 %v470, %v896
      %v921 = vmul.f32 %v471, %v884
      %v922 = vmul.f32 %v472, %v888
      %v923 = vmul.f32 %v473, %v892
      %v924 = vmul.f32 %v474, %v896
      %v925 = vmul.f32 %v475, %v884
      %v926 = vmul.f32 %v476, %v888
      %v927 = vmul.f32 %v477, %v892
      %v928 = vmul.f32 %v478, %v896
      %v929 = vmul.f32 %v653, %v884
      %v930 = vmul.f32 %v654, %v888
      %v931 = vmul.f32 %v655, %v892
      %v932 = vmul.f32 %v656, %v896
      %v933 = vmul.f32 %v657, %v884
      %v934 = vmul.f32 %v658, %v888
      %v935 = vmul.f32 %v659, %v892
      %v936 = vmul.f32 %v660, %v896
      %v937 = vmul.f32 %v661, %v884
      %v938 = vmul.f32 %v662, %v888
      %v939 = vmul.f32 %v663, %v892
      %v940 = vmul.f32 %v664, %v896
      %v941 = vmul.f32 %v665, %v884
      %v942 = vmul.f32 %v666, %v888
      %v943 = vmul.f32 %v667, %v892
      %v944 = vmul.f32 %v668, %v896
      %v945 = vmul.f32 %v669, %v884
      %v946 = vmul.f32 %v670, %v888
      %v947 = vmul.f32 %v671, %v892
      %v948 = vmul.f32 %v672, %v896
      %v949 = vmul.f32 %v673, %v884
      %v950 = vmul.f32 %v674, %v888
      %v951 = vmul.f32 %v675, %v892
      %v952 = vmul.f32 %v676, %v896
      %v953 = vmul.f32 %v677, %v884
      %v954 = vmul.f32 %v678, %v888
      %v955 = vmul.f32 %v679, %v892
      %v956 = vmul.f32 %v680, %v896
      %v957 = vmul.f32 %v681, %v884
      %v958 = vmul.f32 %v682, %v888
      %v959 = vmul.f32 %v683, %v892
      %v960 = vmul.f32 %v684, %v896
      %961 = vmatprep.subr.mxu0 %v654
      %962 = vmatpush1.xpose.msra.mxu0 %v653
      %963 = vmatprep.subr.mxu0 %v658
      %964 = vmatpush1.xpose.msra.mxu0 %v657
      %965 = vmatprep.subr.mxu0 %v662
      %966 = vmatpush1.xpose.msra.mxu0 %v661
      %967 = vmatprep.subr.mxu0 %v666
      %968 = vmatpush1.xpose.msra.mxu0 %v665
      %969 = vmatprep.subr.mxu0 %v670
      %970 = vmatpush1.xpose.msra.mxu0 %v669
      %971 = vmatprep.subr.mxu0 %v674
      %972 = vmatpush1.xpose.msra.mxu0 %v673
      %973 = vmatprep.subr.mxu0 %v678
      %974 = vmatpush1.xpose.msra.mxu0 %v677
      %975 = vmatprep.subr.mxu0 %v682
      %976 = vmatpush1.xpose.msra.mxu0 %v681
      %977 = vmatprep.subr.mxu0 %v850
      %978 = vmatpush1.xpose.msra.mxu0 %v849
      %979 = vmatprep.subr.mxu0 %v854
      %980 = vmatpush1.xpose.msra.mxu0 %v853
      %981 = vmatprep.subr.mxu0 %v858
      %982 = vmatpush1.xpose.msra.mxu0 %v857
      %983 = vmatprep.subr.mxu0 %v862
      %984 = vmatpush1.xpose.msra.mxu0 %v861
      %985 = vmatprep.subr.mxu0 %v866
      %986 = vmatpush1.xpose.msra.mxu0 %v865
      %987 = vmatprep.subr.mxu0 %v870
      %988 = vmatpush1.xpose.msra.mxu0 %v869
      %989 = vmatprep.subr.mxu0 %v874
      %990 = vmatpush1.xpose.msra.mxu0 %v873
      %991 = vmatprep.subr.mxu0 %v878
      %992 = vmatpush1.xpose.msra.mxu0 %v877
      %993 = vmatprep.subr.mxu0 0.0
      %994 = vmatpush1.xpose.msra.mxu0 0.0
      %995 = vmatprep.subr.mxu0 0.0
      %996 = vmatpush1.xpose.msra.mxu0 0.0
      %997 = vmatprep.subr.mxu0 0.0
      %998 = vmatpush1.xpose.msra.mxu0 0.0
      %999 = vmatprep.subr.mxu0 0.0
      %1000 = vmatpush1.xpose.msra.mxu0 0.0
      %1001 = vmatprep.subr.mxu0 0.0
      %1002 = vmatpush1.xpose.msra.mxu0 0.0
      %1003 = vmatprep.subr.mxu0 0.0
      %1004 = vmatpush1.xpose.msra.mxu0 0.0
      %1005 = vmatprep.subr.mxu0 0.0
      %1006 = vmatpush1.xpose.msra.mxu0 0.0
      %1007 = vmatprep.subr.mxu0 0.0
      %1008 = vmatpush1.xpose.msra.mxu0 0.0
      %1009 = vmatprep.subr.mxu0 0.0
      %1010 = vmatpush1.xpose.msra.mxu0 0.0
      %1011 = vmatprep.subr.mxu0 0.0
      %1012 = vmatpush1.xpose.msra.mxu0 0.0
      %1013 = vmatprep.subr.mxu0 0.0
      %1014 = vmatpush1.xpose.msra.mxu0 0.0
      %1015 = vmatprep.subr.mxu0 0.0
      %1016 = vmatpush1.xpose.msra.mxu0 0.0
      %1017 = vmatprep.subr.mxu0 0.0
      %1018 = vmatpush1.xpose.msra.mxu0 0.0
      %1019 = vmatprep.subr.mxu0 0.0
      %1020 = vmatpush1.xpose.msra.mxu0 0.0
      %1021 = vmatprep.subr.mxu0 0.0
      %1022 = vmatpush1.xpose.msra.mxu0 0.0
      %1023 = vmatprep.subr.mxu0 0.0
      %1024 = vmatpush1.xpose.msra.mxu0 0.0
      %1025 = vmatprep.mubr.f32.mxu0 %v898
      %1026 = vmatmul.mubr.f32.gmra.mrb[0].mxu0 %v897
      %v1027 = vpop.f32.mrb[0].mxu0
      %v1028 = vadd.f32 0.0, %v1027
      %v1029 = vpop.f32.mrb[0].mxu0
      %1030 = vmatprep.mubr.f32.mxu0 %v902
      %1031 = vmatmul.mubr.f32.gmra.mrb[0].mxu0 %v901
      %v1032 = vpop.f32.mrb[0].mxu0
      %v1033 = vadd.f32 0.0, %v1032
      %v1034 = vpop.f32.mrb[0].mxu0
      %1035 = vmatprep.mubr.f32.mxu0 %v906
      %1036 = vmatmul.mubr.f32.gmra.mrb[0].mxu0 %v905
      %v1037 = vpop.f32.mrb[0].mxu0
      %v1038 = vadd.f32 0.0, %v1037
      %v1039 = vpop.f32.mrb[0].mxu0
      %1040 = vmatprep.mubr.f32.mxu0 %v910
      %1041 = vmatmul.mubr.f32.gmra.mrb[0].mxu0 %v909
      %v1042 = vpop.f32.mrb[0].mxu0
      %v1043 = vadd.f32 0.0, %v1042
      %v1044 = vpop.f32.mrb[0].mxu0
      %1045 = vmatprep.mubr.f32.mxu0 %v914
      %1046 = vmatmul.mubr.f32.gmra.mrb[0].mxu0 %v913
      %v1047 = vpop.f32.mrb[0].mxu0
      %v1048 = vadd.f32 0.0, %v1047
      %v1049 = vpop.f32.mrb[0].mxu0
      %1050 = vmatprep.mubr.f32.mxu0 %v918
      %1051 = vmatmul.mubr.f32.gmra.mrb[0].mxu0 %v917
      %v1052 = vpop.f32.mrb[0].mxu0
      %v1053 = vadd.f32 0.0, %v1052
      %v1054 = vpop.f32.mrb[0].mxu0
      %1055 = vmatprep.mubr.f32.mxu0 %v922
      %1056 = vmatmul.mubr.f32.gmra.mrb[0].mxu0 %v921
      %v1057 = vpop.f32.mrb[0].mxu0
      %v1058 = vadd.f32 0.0, %v1057
      %v1059 = vpop.f32.mrb[0].mxu0
      %1060 = vmatprep.mubr.f32.mxu0 %v926
      %1061 = vmatmul.mubr.f32.gmra.mrb[0].mxu0 %v925
      %v1062 = vpop.f32.mrb[0].mxu0
      %v1063 = vadd.f32 0.0, %v1062
      %v1064 = vpop.f32.mrb[0].mxu0
      %1065 = vmatprep.mubr.f32.mxu0 %v930
      %1066 = vmatmul.mubr.f32.gmra.mrb[0].mxu0 %v929
      %v1067 = vpop.f32.mrb[0].mxu0
      %v1068 = vadd.f32 0.0, %v1067
      %v1069 = vpop.f32.mrb[0].mxu0
      %1070 = vmatprep.mubr.f32.mxu0 %v934
      %1071 = vmatmul.mubr.f32.gmra.mrb[0].mxu0 %v933
      %v1072 = vpop.f32.mrb[0].mxu0
      %v1073 = vadd.f32 0.0, %v1072
      %v1074 = vpop.f32.mrb[0].mxu0
      %1075 = vmatprep.mubr.f32.mxu0 %v938
      %1076 = vmatmul.mubr.f32.gmra.mrb[0].mxu0 %v937
      %v1077 = vpop.f32.mrb[0].mxu0
      %v1078 = vadd.f32 0.0, %v1077
      %v1079 = vpop.f32.mrb[0].mxu0
      %1080 = vmatprep.mubr.f32.mxu0 %v942
      %1081 = vmatmul.mubr.f32.gmra.mrb[0].mxu0 %v941
      %v1082 = vpop.f32.mrb[0].mxu0
      %v1083 = vadd.f32 0.0, %v1082
      %v1084 = vpop.f32.mrb[0].mxu0
      %1085 = vmatprep.mubr.f32.mxu0 %v946
      %1086 = vmatmul.mubr.f32.gmra.mrb[0].mxu0 %v945
      %v1087 = vpop.f32.mrb[0].mxu0
      %v1088 = vadd.f32 0.0, %v1087
      %v1089 = vpop.f32.mrb[0].mxu0
      %1090 = vmatprep.mubr.f32.mxu0 %v950
      %1091 = vmatmul.mubr.f32.gmra.mrb[0].mxu0 %v949
      %v1092 = vpop.f32.mrb[0].mxu0
      %v1093 = vadd.f32 0.0, %v1092
      %v1094 = vpop.f32.mrb[0].mxu0
      %1095 = vmatprep.mubr.f32.mxu0 %v954
      %1096 = vmatmul.mubr.f32.gmra.mrb[0].mxu0 %v953
      %v1097 = vpop.f32.mrb[0].mxu0
      %v1098 = vadd.f32 0.0, %v1097
      %v1099 = vpop.f32.mrb[0].mxu0
      %1100 = vmatprep.mubr.f32.mxu0 %v958
      %1101 = vmatmul.mubr.f32.gmra.mrb[0].mxu0 %v957
      %v1102 = vpop.f32.mrb[0].mxu0
      %v1103 = vadd.f32 0.0, %v1102
      %v1104 = vpop.f32.mrb[0].mxu0
      %1105 = vdwg.mxu0
      %1106 = vmatprep.subr.mxu0 %v656
      %1107 = vmatpush1.xpose.msra.mxu0 %v655
      %1108 = vmatprep.subr.mxu0 %v660
      %1109 = vmatpush1.xpose.msra.mxu0 %v659
      %1110 = vmatprep.subr.mxu0 %v664
      %1111 = vmatpush1.xpose.msra.mxu0 %v663
      %1112 = vmatprep.subr.mxu0 %v668
      %1113 = vmatpush1.xpose.msra.mxu0 %v667
      %1114 = vmatprep.subr.mxu0 %v672
      %1115 = vmatpush1.xpose.msra.mxu0 %v671
      %1116 = vmatprep.subr.mxu0 %v676
      %1117 = vmatpush1.xpose.msra.mxu0 %v675
      %1118 = vmatprep.subr.mxu0 %v680
      %1119 = vmatpush1.xpose.msra.mxu0 %v679
      %1120 = vmatprep.subr.mxu0 %v684
      %1121 = vmatpush1.xpose.msra.mxu0 %v683
      %1122 = vmatprep.subr.mxu0 %v852
      %1123 = vmatpush1.xpose.msra.mxu0 %v851
      %1124 = vmatprep.subr.mxu0 %v856
      %1125 = vmatpush1.xpose.msra.mxu0 %v855
      %1126 = vmatprep.subr.mxu0 %v860
      %1127 = vmatpush1.xpose.msra.mxu0 %v859
      %1128 = vmatprep.subr.mxu0 %v864
      %1129 = vmatpush1.xpose.msra.mxu0 %v863
      %1130 = vmatprep.subr.mxu0 %v868
      %1131 = vmatpush1.xpose.msra.mxu0 %v867
      %1132 = vmatprep.subr.mxu0 %v872
      %1133 = vmatpush1.xpose.msra.mxu0 %v871
      %1134 = vmatprep.subr.mxu0 %v876
      %1135 = vmatpush1.xpose.msra.mxu0 %v875
      %1136 = vmatprep.subr.mxu0 %v880
      %1137 = vmatpush1.xpose.msra.mxu0 %v879
      %1138 = vmatprep.subr.mxu0 0.0
      %1139 = vmatpush1.xpose.msra.mxu0 0.0
      %1140 = vmatprep.subr.mxu0 0.0
      %1141 = vmatpush1.xpose.msra.mxu0 0.0
      %1142 = vmatprep.subr.mxu0 0.0
      %1143 = vmatpush1.xpose.msra.mxu0 0.0
      %1144 = vmatprep.subr.mxu0 0.0
      %1145 = vmatpush1.xpose.msra.mxu0 0.0
      %1146 = vmatprep.subr.mxu0 0.0
      %1147 = vmatpush1.xpose.msra.mxu0 0.0
      %1148 = vmatprep.subr.mxu0 0.0
      %1149 = vmatpush1.xpose.msra.mxu0 0.0
      %1150 = vmatprep.subr.mxu0 0.0
      %1151 = vmatpush1.xpose.msra.mxu0 0.0
      %1152 = vmatprep.subr.mxu0 0.0
      %1153 = vmatpush1.xpose.msra.mxu0 0.0
      %1154 = vmatprep.subr.mxu0 0.0
      %1155 = vmatpush1.xpose.msra.mxu0 0.0
      %1156 = vmatprep.subr.mxu0 0.0
      %1157 = vmatpush1.xpose.msra.mxu0 0.0
      %1158 = vmatprep.subr.mxu0 0.0
      %1159 = vmatpush1.xpose.msra.mxu0 0.0
      %1160 = vmatprep.subr.mxu0 0.0
      %1161 = vmatpush1.xpose.msra.mxu0 0.0
      %1162 = vmatprep.subr.mxu0 0.0
      %1163 = vmatpush1.xpose.msra.mxu0 0.0
      %1164 = vmatprep.subr.mxu0 0.0
      %1165 = vmatpush1.xpose.msra.mxu0 0.0
      %1166 = vmatprep.subr.mxu0 0.0
      %1167 = vmatpush1.xpose.msra.mxu0 0.0
      %1168 = vmatprep.subr.mxu0 0.0
      %1169 = vmatpush1.xpose.msra.mxu0 0.0
      %1170 = vmatprep.mubr.f32.mxu0 %v900
      %1171 = vmatmul.mubr.f32.gmra.mrb[0].mxu0 %v899
      %v1172 = vpop.f32.mrb[0].mxu0
      %v1173 = vadd.f32 %v1028, %v1172
      %v1174 = vpop.f32.mrb[0].mxu0
      %1175 = vmatprep.mubr.f32.mxu0 %v904
      %1176 = vmatmul.mubr.f32.gmra.mrb[0].mxu0 %v903
      %v1177 = vpop.f32.mrb[0].mxu0
      %v1178 = vadd.f32 %v1033, %v1177
      %v1179 = vpop.f32.mrb[0].mxu0
      %1180 = vmatprep.mubr.f32.mxu0 %v908
      %1181 = vmatmul.mubr.f32.gmra.mrb[0].mxu0 %v907
      %v1182 = vpop.f32.mrb[0].mxu0
      %v1183 = vadd.f32 %v1038, %v1182
      %v1184 = vpop.f32.mrb[0].mxu0
      %1185 = vmatprep.mubr.f32.mxu0 %v912
      %1186 = vmatmul.mubr.f32.gmra.mrb[0].mxu0 %v911
      %v1187 = vpop.f32.mrb[0].mxu0
      %v1188 = vadd.f32 %v1043, %v1187
      %v1189 = vpop.f32.mrb[0].mxu0
      %1190 = vmatprep.mubr.f32.mxu0 %v916
      %1191 = vmatmul.mubr.f32.gmra.mrb[0].mxu0 %v915
      %v1192 = vpop.f32.mrb[0].mxu0
      %v1193 = vadd.f32 %v1048, %v1192
      %v1194 = vpop.f32.mrb[0].mxu0
      %1195 = vmatprep.mubr.f32.mxu0 %v920
      %1196 = vmatmul.mubr.f32.gmra.mrb[0].mxu0 %v919
      %v1197 = vpop.f32.mrb[0].mxu0
      %v1198 = vadd.f32 %v1053, %v1197
      %v1199 = vpop.f32.mrb[0].mxu0
      %1200 = vmatprep.mubr.f32.mxu0 %v924
      %1201 = vmatmul.mubr.f32.gmra.mrb[0].mxu0 %v923
      %v1202 = vpop.f32.mrb[0].mxu0
      %v1203 = vadd.f32 %v1058, %v1202
      %v1204 = vpop.f32.mrb[0].mxu0
      %1205 = vmatprep.mubr.f32.mxu0 %v928
      %1206 = vmatmul.mubr.f32.gmra.mrb[0].mxu0 %v927
      %v1207 = vpop.f32.mrb[0].mxu0
      %v1208 = vadd.f32 %v1063, %v1207
      %v1209 = vpop.f32.mrb[0].mxu0
      %1210 = vmatprep.mubr.f32.mxu0 %v932
      %1211 = vmatmul.mubr.f32.gmra.mrb[0].mxu0 %v931
      %v1212 = vpop.f32.mrb[0].mxu0
      %v1213 = vadd.f32 %v1068, %v1212
      %v1214 = vpop.f32.mrb[0].mxu0
      %1215 = vmatprep.mubr.f32.mxu0 %v936
      %1216 = vmatmul.mubr.f32.gmra.mrb[0].mxu0 %v935
      %v1217 = vpop.f32.mrb[0].mxu0
      %v1218 = vadd.f32 %v1073, %v1217
      %v1219 = vpop.f32.mrb[0].mxu0
      %1220 = vmatprep.mubr.f32.mxu0 %v940
      %1221 = vmatmul.mubr.f32.gmra.mrb[0].mxu0 %v939
      %v1222 = vpop.f32.mrb[0].mxu0
      %v1223 = vadd.f32 %v1078, %v1222
      %v1224 = vpop.f32.mrb[0].mxu0
      %1225 = vmatprep.mubr.f32.mxu0 %v944
      %1226 = vmatmul.mubr.f32.gmra.mrb[0].mxu0 %v943
      %v1227 = vpop.f32.mrb[0].mxu0
      %v1228 = vadd.f32 %v1083, %v1227
      %v1229 = vpop.f32.mrb[0].mxu0
      %1230 = vmatprep.mubr.f32.mxu0 %v948
      %1231 = vmatmul.mubr.f32.gmra.mrb[0].mxu0 %v947
      %v1232 = vpop.f32.mrb[0].mxu0
      %v1233 = vadd.f32 %v1088, %v1232
      %v1234 = vpop.f32.mrb[0].mxu0
      %1235 = vmatprep.mubr.f32.mxu0 %v952
      %1236 = vmatmul.mubr.f32.gmra.mrb[0].mxu0 %v951
      %v1237 = vpop.f32.mrb[0].mxu0
      %v1238 = vadd.f32 %v1093, %v1237
      %v1239 = vpop.f32.mrb[0].mxu0
      %1240 = vmatprep.mubr.f32.mxu0 %v956
      %1241 = vmatmul.mubr.f32.gmra.mrb[0].mxu0 %v955
      %v1242 = vpop.f32.mrb[0].mxu0
      %v1243 = vadd.f32 %v1098, %v1242
      %v1244 = vpop.f32.mrb[0].mxu0
      %1245 = vmatprep.mubr.f32.mxu0 %v960
      %1246 = vmatmul.mubr.f32.gmra.mrb[0].mxu0 %v959
      %v1247 = vpop.f32.mrb[0].mxu0
      %v1248 = vadd.f32 %v1103, %v1247
      %v1249 = vpop.f32.mrb[0].mxu0
      %1250 = vdwg.mxu0
      %1251 = vst [vmem:[%s152] sm:$0xff] %v1173
      %1252 = vst [vmem:[%s152 + $0x8] sm:$0xff] %v1178
      %1253 = vst [vmem:[%s152 + $0x10] sm:$0xff] %v1183
      %1254 = vst [vmem:[%s152 + $0x18] sm:$0xff] %v1188
      %1255 = vst [vmem:[%s152 + $0x20] sm:$0xff] %v1193
      %1256 = vst [vmem:[%s152 + $0x28] sm:$0xff] %v1198
      %1257 = vst [vmem:[%s152 + $0x30] sm:$0xff] %v1203
      %1258 = vst [vmem:[%s152 + $0x38] sm:$0xff] %v1208
      %1259 = vst [vmem:[%s152 + $0x40] sm:$0xff] %v1213
      %1260 = vst [vmem:[%s152 + $0x48] sm:$0xff] %v1218
      %1261 = vst [vmem:[%s152 + $0x50] sm:$0xff] %v1223
      %1262 = vst [vmem:[%s152 + $0x58] sm:$0xff] %v1228
      %1263 = vst [vmem:[%s152 + $0x60] sm:$0xff] %v1233
      %1264 = vst [vmem:[%s152 + $0x68] sm:$0xff] %v1238
      %1265 = vst [vmem:[%s152 + $0x70] sm:$0xff] %v1243
      %1266 = vst [vmem:[%s152 + $0x78] sm:$0xff] %v1248
      %p1267 = scmp.lt.s32.totalorder %s16, 3
      %s1268 = scalar_select %p1267, %s16, 3
      %p1269 = scmp.lt.s32.totalorder %s17, 0
      %s1270 = scalar_select %p1269, %s17, 0
      %s1271 = smul.addr %s1270, 16
      %s1272 = smul.addr %s1268, 16
      %s1273 = sadd.s32 %s1271, %s1272
      %s1274 = smul.addr %s1273, 8
      %s1275 = scalar_lea.vmem %s1, %s1274
      // Predicated region
      $region25: #{hist_loss.1} parent=23 // pred_check
        %p1276 = pneg %p72
      $region26: #{hist_loss.1} parent=23 // pred_check_branch
        %1278 = sbr.rel (%p1276) target = $region28
      $region27: #{hist_loss.1} parent=23 // pred_region
        _
      $region28: #{hist_loss.1} parent=23 // pred_fallthru
        _
    $region24: #{hist_loss.1} parent=5 // pred_fallthru
      _
    %p1279 = scmp.le.s32.totalorder 2, %s7
    // Predicated region
    $region29: #{hist_loss.1} parent=5 // pred_check
      %p1280 = pneg %p1279
    $region30: #{hist_loss.1} parent=5 // pred_check_branch
      %1282 = sbr.rel (%p1280) target = $region32
    $region31: #{hist_loss.1} parent=5 // pred_region
      %s1283 = ssub.s32 %s7, 2
      // Predicated region
      $region33: #{hist_loss.1} parent=31 // pred_check
        %p1284 = pneg %p78
      $region34: #{hist_loss.1} parent=31 // pred_check_branch
        %1286 = sbr.rel (%p1284) target = $region36
      $region35: #{hist_loss.1} parent=31 // pred_region
        %p1287 = scmp.lt.s32.totalorder %s18, 3
        %s1288 = scalar_select %p1287, %s18, 3
        %p1289 = scmp.lt.s32.totalorder %s19, 0
        %s1290 = scalar_select %p1289, %s19, 0
        %s1291 = smul.addr %s1290, 16
        %s1292 = smul.addr %s1288, 16
        %s1293 = sadd.s32 %s1291, %s1292
        %s1294 = smul.addr %s1293, 8
        %s1295 = scalar_lea.vmem %s1, %s1294
      $region36: #{hist_loss.1} parent=31 // pred_fallthru
        _
    $region32: #{hist_loss.1} parent=5 // pred_fallthru
      _
  $region6: #{hist_loss.1} parent=0 // loop_footer
    %s11 = sadd.s32 1, %s7
  $region7: #{hist_loss.1} parent=0 // loop_footer_branch
    %6 = sbr.rel target = $region3
  $region8: #{hist_loss.1} parent=0 // loop_exit
    _

</llo_original>
